<compile_context>
chip_gen: v7x
topology: tpu7x:2x2x1
jax: 0.10.0
libtpu: 0.0.40
codegen_flags: <defaults>
</compile_context>

<pallas_src>
import math
from functools import partial

import jax
import jax.numpy as jnp
from jax import lax
from jax.experimental import pallas as pl
from jax.experimental.pallas import tpu as pltpu

MASK_VALUE = -1e30


def _vmem_limit(est_bytes):
    """Scoped-VMEM limit: estimate * fudge + headroom, floored/capped."""
    return int(min(max(int(est_bytes * 1.5) + (4 << 20), 16 << 20), 100 << 20))


# --------------------- fused multi-projection (Q/K/V) -----------------------

def _make_proj_kernel(n_proj):
    def kernel(*refs):
        x_ref = refs[0]
        o_refs = refs[1 + 2 * n_proj:]
        x = x_ref[...]                        # bf16 (pre-cast in wrapper)
        for i in range(n_proj):
            w_ref = refs[1 + 2 * i]           # bf16 (pre-cast in wrapper)
            b_ref = refs[2 + 2 * i]           # f32 bias
            y = jnp.dot(x, w_ref[...],
                        preferred_element_type=jnp.float32) + b_ref[...]
            o_refs[i][...] = y.astype(o_refs[i].dtype)
    return kernel


def fused_projections(x2d, weights, biases, out_dtype=jnp.bfloat16):
    """Apply n linear layers to the same activation with a single read of x.

    x2d: (N, f_in) bf16.  weights[i]: (f_in, f_out) bf16.  biases[i]: (f_out,).
    Returns a tuple of n (N, f_out) arrays in `out_dtype`.
    """
    n, f_in = x2d.shape
    f_out = weights[0].shape[1]
    n_proj = len(weights)
    tm = n if n <= 512 else 512

    # Column-block the weights/outputs only when the resident bf16 weights get
    # large (v7x has 64 MiB VMEM).  Blocking requires f_out % 128 == 0.
    w_bytes = n_proj * f_in * f_out * 2
    if w_bytes > (24 << 20) and f_out % 128 == 0:
        tn = max(128, ((24 << 20) // (n_proj * f_in * 2)) // 128 * 128)
        tn = min(tn, f_out)
    else:
        tn = f_out

    # Columns outermost: weight blocks stay resident across the inner row axis.
    grid = (pl.cdiv(f_out, tn), pl.cdiv(n, tm))

    in_specs = [pl.BlockSpec((tm, f_in), lambda j, i: (i, 0))]
    args = [x2d]
    for w, b in zip(weights, biases):
        in_specs.append(pl.BlockSpec((f_in, tn), lambda j, i: (0, j)))
        in_specs.append(pl.BlockSpec((1, tn), lambda j, i: (0, j)))
        args.append(w)
        args.append(b.reshape(1, f_out).astype(jnp.float32))
    out_specs = tuple(pl.BlockSpec((tm, tn), lambda j, i: (i, j))
                      for _ in range(n_proj))
    out_shape = tuple(jax.ShapeDtypeStruct((n, f_out), out_dtype)
                      for _ in range(n_proj))

    out_isz = jnp.dtype(out_dtype).itemsize
    est = (2 * tm * f_in * x2d.dtype.itemsize
           + n_proj * 2 * (f_in * tn * 2 + 8 * max(tn, 128) * 4)
           + n_proj * 2 * tm * tn * out_isz
           + n_proj * tm * max(tn, 128) * 4)

    return pl.pallas_call(
        _make_proj_kernel(n_proj),
        out_shape=out_shape,
        grid=grid,
        in_specs=in_specs,
        out_specs=out_specs,
        compiler_params=pltpu.CompilerParams(
            dimension_semantics=("parallel", "parallel"),
            vmem_limit_bytes=_vmem_limit(est)),
    )(*args)


# ------------------- flash attention + fused output projection --------------

def _mha_kernel(rv_ref, km_ref, q_ref, k_ref, v_ref, wo_ref, bo_ref, o_ref,
                qh_scr, m_scr, l_scr, acc_scr, *, num_heads, head_dim):
    ki = pl.program_id(2)

    @pl.when(ki == 0)
    def _init():
        m_scr[...] = jnp.full(m_scr.shape, MASK_VALUE, m_scr.dtype)
        l_scr[...] = jnp.zeros(l_scr.shape, l_scr.dtype)
        acc_scr[...] = jnp.zeros(acc_scr.shape, acc_scr.dtype)
        # Hoisted head split of Q: q is invariant across the kv axis, so the
        # lane slicing happens once per q tile instead of once per kv step.
        qb = q_ref[0]                                           # (tq, F) bf16
        for h in range(num_heads):
            qh_scr[h] = qb[:, h * head_dim:(h + 1) * head_dim]

    km = km_ref[0]                                              # (1, tkv) {0,1}
    kbias = jnp.where(km > 0.0, 0.0, MASK_VALUE)                # additive mask
    kb = k_ref[0]                                               # (tkv, F) bf16
    vb = v_ref[0]                                               # (tkv, F) bf16

    for h in range(num_heads):                                  # static unroll
        sl = slice(h * head_dim, (h + 1) * head_dim)
        # scores (tq, tkv): contract head_dim of both operands (no transpose)
        s = lax.dot_general(qh_scr[h], kb[:, sl], (((1,), (1,)), ((), ())),
                            preferred_element_type=jnp.float32)
        s = s + kbias
        m_prev = m_scr[h]
        m_new = jnp.maximum(m_prev, jnp.max(s, axis=-1, keepdims=True))
        alpha = jnp.exp(m_prev - m_new)
        p = jnp.exp(s - m_new)                                  # f32 softmax
        l_scr[h] = alpha * l_scr[h] + jnp.sum(p, axis=-1, keepdims=True)
        acc_scr[h] = alpha * acc_scr[h] + jnp.dot(
            p.astype(jnp.bfloat16), vb[:, sl],
            preferred_element_type=jnp.float32)
        m_scr[h] = m_new

    @pl.when(ki == pl.num_programs(2) - 1)
    def _finalize():
        # Assemble a lane-dense (tq, F) slab once, then a single full-depth
        # (tq,F) x (F,F) output projection (bias + nan_to_num fused in).
        attn = jnp.concatenate(
            [acc_scr[h] * pl.reciprocal(l_scr[h], approx=True)
             for h in range(num_heads)], axis=-1)
        out = jnp.dot(attn.astype(jnp.bfloat16), wo_ref[...],
                      preferred_element_type=jnp.float32) + bo_ref[...]
        # torch.nan_to_num: fully-masked query rows become exactly 0.
        out = jnp.where(rv_ref[0] > 0.0, out, 0.0)
        o_ref[0] = out.astype(o_ref.dtype)


def pallas_mha(q, k, v, rv, km, wo, bo, *, num_heads, head_dim, tkv, out_dtype):
    b, sq, f = q.shape
    skv = k.shape[1]
    assert skv % tkv == 0, "wrapper must pad kv to a tile multiple"

    tq = sq if sq <= 512 else 512
    # v7x has 2 TensorCores sharded over the parallel axes: keep extent >= 2.
    if b * pl.cdiv(sq, tq) < 2 and tq % 16 == 0 and tq > 8:
        tq //= 2
    grid = (b, pl.cdiv(sq, tq), skv // tkv)

    lane = 128
    pad_l = lambda d: ((d + lane - 1) // lane) * lane
    out_isz = jnp.dtype(out_dtype).itemsize
    est = (2 * tq * f * 2                       # q (bf16, double-buffered)
           + 2 * 2 * tkv * f * 2                # k, v
           + 2 * tq * f * out_isz               # out
           + f * f * 2 + 8 * pad_l(f) * 4       # wo, bo
           + 2 * tq * lane * 4 + 2 * 8 * pad_l(tkv) * 4   # rv, km
           + num_heads * tq * pad_l(head_dim) * (2 + 4)   # q_heads + acc
           + 2 * num_heads * tq * lane * 4)               # running max/sum

    kernel = partial(_mha_kernel, num_heads=num_heads, head_dim=head_dim)
    return pl.pallas_call(
        kernel,
        out_shape=jax.ShapeDtypeStruct((b, sq, f), out_dtype),
        grid_spec=pltpu.PrefetchScalarGridSpec(
            num_scalar_prefetch=0,
            grid=grid,
            in_specs=[
                pl.BlockSpec((1, tq, 1), lambda bi, qi, ki: (bi, qi, 0)),   # row-valid
                pl.BlockSpec((1, 1, tkv), lambda bi, qi, ki: (bi, 0, ki)),  # kv mask
                pl.BlockSpec((1, tq, f), lambda bi, qi, ki: (bi, qi, 0)),   # q
                pl.BlockSpec((1, tkv, f), lambda bi, qi, ki: (bi, ki, 0)),  # k
                pl.BlockSpec((1, tkv, f), lambda bi, qi, ki: (bi, ki, 0)),  # v
                pl.BlockSpec((f, f), lambda bi, qi, ki: (0, 0)),            # wo
                pl.BlockSpec((1, f), lambda bi, qi, ki: (0, 0)),            # bo
            ],
            out_specs=pl.BlockSpec((1, tq, f), lambda bi, qi, ki: (bi, qi, 0)),
            scratch_shapes=[
                pltpu.VMEM((num_heads, tq, head_dim), jnp.bfloat16),  # q heads
                pltpu.VMEM((num_heads, tq, 1), jnp.float32),          # running max
                pltpu.VMEM((num_heads, tq, 1), jnp.float32),          # running sum
                pltpu.VMEM((num_heads, tq, head_dim), jnp.float32),   # accumulator
            ],
        ),
        compiler_params=pltpu.CompilerParams(
            dimension_semantics=("parallel", "parallel", "arbitrary"),
            vmem_limit_bytes=_vmem_limit(est)),
    )(rv, km, q, k, v, wo, bo)


# ------------------------------ module forward -------------------------------

def headed_attention_block(params, q, k=None, v=None, q_mask=None, kv_mask=None,
                           out_dtype=None):
    model_dim = params["model_dim"]
    num_heads = params["num_heads"]
    head_dim = model_dim // num_heads

    if k is None:
        k = q
        if kv_mask is None:
            kv_mask = q_mask
    if v is None:
        v = k
    self_attention = (k is q) and (v is q)
    kv_shared = v is k

    b, sq, f = q.shape
    skv = k.shape[1]
    if q_mask is None:
        q_mask = jnp.ones((b, sq), dtype=bool)
    if kv_mask is None:
        kv_mask = jnp.ones((b, skv), dtype=bool)
    # TODO(synk): float-valued / 4D user attn_mask branch of merge_masks not wired up.

    # Fold the 1/sqrt(model_dim) query scaling (module quirk: model_dim, not
    # head_dim) into the q projection; pre-cast weights/activations to bf16.
    bf = jnp.bfloat16
    scale = 1.0 / math.sqrt(model_dim)
    wq = (params["wq"] * scale).astype(bf)
    bq = (params["bq"] * scale).astype(jnp.float32)
    wk = params["wk"].astype(bf)
    bk = params["bk"].astype(jnp.float32)
    wv = params["wv"].astype(bf)
    bv = params["bv"].astype(jnp.float32)
    wo = params["wo"].astype(bf)
    bo = params["bo"].reshape(1, model_dim).astype(jnp.float32)

    q2d = q.reshape(-1, f).astype(bf)
    if self_attention:
        qp, kp, vp = fused_projections(q2d, [wq, wk, wv], [bq, bk, bv])
    else:
        (qp,) = fused_projections(q2d, [wq], [bq])
        k2d = k.reshape(-1, f).astype(bf)
        if kv_shared:
            kp, vp = fused_projections(k2d, [wk, wv], [bk, bv])
        else:
            (kp,) = fused_projections(k2d, [wk], [bk])
            (vp,) = fused_projections(v.reshape(-1, f).astype(bf), [wv], [bv])
    qp = qp.reshape(b, sq, f)
    kp = kp.reshape(b, skv, f)
    vp = vp.reshape(b, skv, f)

    # Pad K/V and kv_mask to a kv-tile multiple so the attention kernel never
    # sees a partial kv tile (removes the per-step partial-tile vselect).
    tkv = skv if skv <= 512 else 512
    skv_p = ((skv + tkv - 1) // tkv) * tkv
    if skv_p != skv:
        pad = skv_p - skv
        kp = jnp.pad(kp, ((0, 0), (0, pad), (0, 0)))
        vp = jnp.pad(vp, ((0, 0), (0, pad), (0, 0)))
        kv_mask = jnp.pad(kv_mask, ((0, 0), (0, pad)))

    # A row is "fully masked" iff the query is padded or there is no valid key
    # (matches the reference's softmax-NaN -> nan_to_num -> 0 behaviour).
    row_valid = q_mask & jnp.any(kv_mask, axis=-1, keepdims=True)
    rv = row_valid.astype(jnp.float32)[:, :, None]      # (B, Sq, 1)
    km = kv_mask.astype(jnp.float32)[:, None, :]        # (B, 1, Skv_p)

    out_dtype = q.dtype if out_dtype is None else out_dtype
    return pallas_mha(qp, kp, vp, rv, km, wo, bo,
                      num_heads=num_heads, head_dim=head_dim,
                      tkv=tkv, out_dtype=out_dtype)


# ------------------------- pure-JAX reference (check) -----------------------

def reference_forward(params, q, k=None, v=None, q_mask=None, kv_mask=None):
    model_dim = params["model_dim"]
    num_heads = params["num_heads"]
    head_dim = model_dim // num_heads
    if k is None:
        k = q
        if kv_mask is None:
            kv_mask = q_mask
    if v is None:
        v = k
    b, sq, f = q.shape
    skv = k.shape[1]
    if q_mask is None:
        q_mask = jnp.ones((b, sq), bool)
    if kv_mask is None:
        kv_mask = jnp.ones((b, skv), bool)
    hi = jax.lax.Precision.HIGHEST

    def lin(x, w, bb):
        return jnp.dot(x, w, precision=hi) + bb

    pad = q_mask[:, :, None] & kv_mask[:, None, :]
    mask_f = jnp.where(pad, 0.0, -jnp.inf).astype(jnp.float32)

    def heads(x, w, bb, s):
        y = lin(x, w, bb).reshape(b, s, num_heads, head_dim)
        return jnp.transpose(y, (0, 2, 1, 3)).reshape(b * num_heads, s, head_dim)

    qh = heads(q, params["wq"], params["bq"], sq) / math.sqrt(model_dim)
    kh = heads(k, params["wk"], params["bk"], skv)
    vh = heads(v, params["wv"], params["bv"], skv)

    mask_h = jnp.broadcast_to(mask_f[:, None], (b, num_heads, sq, skv))
    mask_h = mask_h.reshape(b * num_heads, sq, skv)

    scores = jnp.einsum("bqd,bkd->bqk", qh, kh, precision=hi) + mask_h
    p = jax.nn.softmax(scores, axis=-1)            # NaN on fully-masked rows
    o = jnp.einsum("bqk,bkd->bqd", p, vh, precision=hi)
    o = o.reshape(b, num_heads, sq, head_dim)
    o = jnp.transpose(o, (0, 2, 1, 3)).reshape(b, sq, model_dim)
    o = lin(o, params["wo"], params["bo"])
    return jnp.nan_to_num(o)


# ----------------------------------- main ------------------------------------

if __name__ == "__main__":
    B, S, F, H = 2, 8, 32, 4
    key = jax.random.PRNGKey(0)
    ks = jax.random.split(key, 12)

    params = {
        "model_dim": F,
        "num_heads": H,
        "wq": 0.1 * jax.random.normal(ks[0], (F, F), jnp.float32),
        "bq": 0.1 * jax.random.normal(ks[1], (F,), jnp.float32),
        "wk": 0.1 * jax.random.normal(ks[2], (F, F), jnp.float32),
        "bk": 0.1 * jax.random.normal(ks[3], (F,), jnp.float32),
        "wv": 0.1 * jax.random.normal(ks[4], (F, F), jnp.float32),
        "bv": 0.1 * jax.random.normal(ks[5], (F,), jnp.float32),
        "wo": 0.1 * jax.random.normal(ks[6], (F, F), jnp.float32),
        "bo": 0.1 * jax.random.normal(ks[7], (F,), jnp.float32),
    }

    q = jax.random.normal(ks[8], (B, S, F), jnp.float32)
    # batch 0: all queries valid, last 3 kv positions padded
    # batch 1: last 2 queries padded (-> fully-masked rows, exercise nan_to_num)
    q_mask = jnp.stack([jnp.ones((S,), bool),
                        jnp.arange(S) < S - 2])
    kv_mask = jnp.stack([jnp.arange(S) < S - 3,
                         jnp.ones((S,), bool)])

    # --- self-attention (fused QKV projection path) ---
    out = headed_attention_block(params, q, q_mask=q_mask, kv_mask=kv_mask)
    out = jax.block_until_ready(out)
    ref = reference_forward(params, q, q_mask=q_mask, kv_mask=kv_mask)
    assert out.shape == (B, S, F)
    assert jnp.allclose(out, ref, atol=2e-2, rtol=2e-2), (
        f"self-attn max abs diff {jnp.max(jnp.abs(out - ref))}")

    # --- cross-attention (separate Q, fused K/V projection path) ---
    Skv = 16
    k_in = jax.random.normal(ks[9], (B, Skv, F), jnp.float32)
    kv_mask2 = jnp.stack([jnp.arange(Skv) < Skv - 5,
                          jnp.ones((Skv,), bool)])
    out2 = headed_attention_block(params, q, k=k_in,
                                  q_mask=q_mask, kv_mask=kv_mask2)
    out2 = jax.block_until_ready(out2)
    ref2 = reference_forward(params, q, k=k_in,
                             q_mask=q_mask, kv_mask=kv_mask2)
    assert out2.shape == (B, S, F)
    assert jnp.allclose(out2, ref2, atol=2e-2, rtol=2e-2), (
        f"cross-attn max abs diff {jnp.max(jnp.abs(out2 - ref2))}")

    print("KERNEL_OK")
</pallas_src>

<mosaic_0001>
module attributes {stable_mosaic.version = 11 : i64} {
  func.func @kernel(%arg0: i32, %arg1: i32, %arg2: memref<16x32xbf16, #tpu.memory_space<vmem>>, %arg3: memref<32x32xbf16, #tpu.memory_space<vmem>>, %arg4: memref<1x32xf32, #tpu.memory_space<vmem>>, %arg5: memref<32x32xbf16, #tpu.memory_space<vmem>>, %arg6: memref<1x32xf32, #tpu.memory_space<vmem>>, %arg7: memref<32x32xbf16, #tpu.memory_space<vmem>>, %arg8: memref<1x32xf32, #tpu.memory_space<vmem>>, %arg9: memref<16x32xbf16, #tpu.memory_space<vmem>>, %arg10: memref<16x32xbf16, #tpu.memory_space<vmem>>, %arg11: memref<16x32xbf16, #tpu.memory_space<vmem>>) attributes {dimension_semantics = [#tpu.dimension_semantics<parallel>, #tpu.dimension_semantics<parallel>], iteration_bounds = array<i64: 1, 1>, scalar_prefetch = 0 : i64, scratch_operands = 0 : i64, tpu.core_type = #tpu.core_type<tc>, window_params = [{transform_indices = @transform_0, window_bounds = array<i64: 16, 32>}, {transform_indices = @transform_1, window_bounds = array<i64: 32, 32>}, {transform_indices = @transform_2, window_bounds = array<i64: 1, 32>}, {transform_indices = @transform_3, window_bounds = array<i64: 32, 32>}, {transform_indices = @transform_4, window_bounds = array<i64: 1, 32>}, {transform_indices = @transform_5, window_bounds = array<i64: 32, 32>}, {transform_indices = @transform_6, window_bounds = array<i64: 1, 32>}, {transform_indices = @transform_7, window_bounds = array<i64: 16, 32>}, {transform_indices = @transform_8, window_bounds = array<i64: 16, 32>}, {transform_indices = @transform_9, window_bounds = array<i64: 16, 32>}]} {
    %c0 = arith.constant 0 : index
    %c0_0 = arith.constant 0 : index
    %0 = vector.load %arg2[%c0, %c0_0] : memref<16x32xbf16, #tpu.memory_space<vmem>>, vector<16x32xbf16>
    %c0_1 = arith.constant 0 : index
    %c0_2 = arith.constant 0 : index
    %1 = vector.load %arg3[%c0_1, %c0_2] : memref<32x32xbf16, #tpu.memory_space<vmem>>, vector<32x32xbf16>
    %cst = arith.constant dense<0.000000e+00> : vector<16x32xf32>
    %2 = tpu.matmul %0, %1, %cst {dimension_numbers = #tpu.dot_dimension_numbers<[1], [0], [0], [1], [0, 0, 1, 1], [], []>} : vector<16x32xbf16>, vector<32x32xbf16>, vector<16x32xf32> -> vector<16x32xf32>
    %c0_3 = arith.constant 0 : index
    %c0_4 = arith.constant 0 : index
    %3 = vector.load %arg4[%c0_3, %c0_4] : memref<1x32xf32, #tpu.memory_space<vmem>>, vector<1x32xf32>
    %4 = vector.broadcast %3 : vector<1x32xf32> to vector<16x32xf32>
    %5 = arith.addf %2, %4 : vector<16x32xf32>
    %6 = arith.truncf %5 : vector<16x32xf32> to vector<16x32xbf16>
    %c0_5 = arith.constant 0 : index
    %c0_6 = arith.constant 0 : index
    %7 = vector.load %arg9[%c0_5, %c0_6] : memref<16x32xbf16, #tpu.memory_space<vmem>>, vector<16x32xbf16>
    tpu.vector_store %arg9[%c0_5, %c0_6], %6 {strides = array<i32>} : memref<16x32xbf16, #tpu.memory_space<vmem>>, vector<16x32xbf16>,
    %c0_7 = arith.constant 0 : index
    %c0_8 = arith.constant 0 : index
    %8 = vector.load %arg5[%c0_7, %c0_8] : memref<32x32xbf16, #tpu.memory_space<vmem>>, vector<32x32xbf16>
    %cst_9 = arith.constant dense<0.000000e+00> : vector<16x32xf32>
    %9 = tpu.matmul %0, %8, %cst_9 {dimension_numbers = #tpu.dot_dimension_numbers<[1], [0], [0], [1], [0, 0, 1, 1], [], []>} : vector<16x32xbf16>, vector<32x32xbf16>, vector<16x32xf32> -> vector<16x32xf32>
    %c0_10 = arith.constant 0 : index
    %c0_11 = arith.constant 0 : index
    %10 = vector.load %arg6[%c0_10, %c0_11] : memref<1x32xf32, #tpu.memory_space<vmem>>, vector<1x32xf32>
    %11 = vector.broadcast %10 : vector<1x32xf32> to vector<16x32xf32>
    %12 = arith.addf %9, %11 : vector<16x32xf32>
    %13 = arith.truncf %12 : vector<16x32xf32> to vector<16x32xbf16>
    %c0_12 = arith.constant 0 : index
    %c0_13 = arith.constant 0 : index
    %14 = vector.load %arg10[%c0_12, %c0_13] : memref<16x32xbf16, #tpu.memory_space<vmem>>, vector<16x32xbf16>
    tpu.vector_store %arg10[%c0_12, %c0_13], %13 {strides = array<i32>} : memref<16x32xbf16, #tpu.memory_space<vmem>>, vector<16x32xbf16>,
    %c0_14 = arith.constant 0 : index
    %c0_15 = arith.constant 0 : index
    %15 = vector.load %arg7[%c0_14, %c0_15] : memref<32x32xbf16, #tpu.memory_space<vmem>>, vector<32x32xbf16>
    %cst_16 = arith.constant dense<0.000000e+00> : vector<16x32xf32>
    %16 = tpu.matmul %0, %15, %cst_16 {dimension_numbers = #tpu.dot_dimension_numbers<[1], [0], [0], [1], [0, 0, 1, 1], [], []>} : vector<16x32xbf16>, vector<32x32xbf16>, vector<16x32xf32> -> vector<16x32xf32>
    %c0_17 = arith.constant 0 : index
    %c0_18 = arith.constant 0 : index
    %17 = vector.load %arg8[%c0_17, %c0_18] : memref<1x32xf32, #tpu.memory_space<vmem>>, vector<1x32xf32>
    %18 = vector.broadcast %17 : vector<1x32xf32> to vector<16x32xf32>
    %19 = arith.addf %16, %18 : vector<16x32xf32>
    %20 = arith.truncf %19 : vector<16x32xf32> to vector<16x32xbf16>
    %c0_19 = arith.constant 0 : index
    %c0_20 = arith.constant 0 : index
    %21 = vector.load %arg11[%c0_19, %c0_20] : memref<16x32xbf16, #tpu.memory_space<vmem>>, vector<16x32xbf16>
    tpu.vector_store %arg11[%c0_19, %c0_20], %20 {strides = array<i32>} : memref<16x32xbf16, #tpu.memory_space<vmem>>, vector<16x32xbf16>,
    return
  }
  func.func @transform_0(%arg0: i32, %arg1: i32) -> (i32, i32) {
    %c0_i32 = arith.constant 0 : i32
    %c0_i32_0 = arith.constant 0 : i32
    return %arg1, %c0_i32 : i32, i32
  }
  func.func @transform_1(%arg0: i32, %arg1: i32) -> (i32, i32) {
    %c0_i32 = arith.constant 0 : i32
    %c0_i32_0 = arith.constant 0 : i32
    return %c0_i32, %arg0 : i32, i32
  }
  func.func @transform_2(%arg0: i32, %arg1: i32) -> (i32, i32) {
    %c0_i32 = arith.constant 0 : i32
    %c0_i32_0 = arith.constant 0 : i32
    return %c0_i32, %arg0 : i32, i32
  }
  func.func @transform_3(%arg0: i32, %arg1: i32) -> (i32, i32) {
    %c0_i32 = arith.constant 0 : i32
    %c0_i32_0 = arith.constant 0 : i32
    return %c0_i32, %arg0 : i32, i32
  }
  func.func @transform_4(%arg0: i32, %arg1: i32) -> (i32, i32) {
    %c0_i32 = arith.constant 0 : i32
    %c0_i32_0 = arith.constant 0 : i32
    return %c0_i32, %arg0 : i32, i32
  }
  func.func @transform_5(%arg0: i32, %arg1: i32) -> (i32, i32) {
    %c0_i32 = arith.constant 0 : i32
    %c0_i32_0 = arith.constant 0 : i32
    return %c0_i32, %arg0 : i32, i32
  }
  func.func @transform_6(%arg0: i32, %arg1: i32) -> (i32, i32) {
    %c0_i32 = arith.constant 0 : i32
    %c0_i32_0 = arith.constant 0 : i32
    return %c0_i32, %arg0 : i32, i32
  }
  func.func @transform_7(%arg0: i32, %arg1: i32) -> (i32, i32) {
    %c0_i32 = arith.constant 0 : i32
    return %arg1, %arg0 : i32, i32
  }
  func.func @transform_8(%arg0: i32, %arg1: i32) -> (i32, i32) {
    %c0_i32 = arith.constant 0 : i32
    return %arg1, %arg0 : i32, i32
  }
  func.func @transform_9(%arg0: i32, %arg1: i32) -> (i32, i32) {
    %c0_i32 = arith.constant 0 : i32
    return %arg1, %arg0 : i32, i32
  }
}

</mosaic_0001>

<llo_original>
// kernel: tpu_custom_call.1
$region0: #{tpu_custom_call.1}
  #allocation0 [shape = 'u32[]', space=smem, size = 0x4, offset = 0x4, fixed_abs, tag = 'smem constant byte address 0x4 - core index']
  #allocation1 [shape = 'u32[144,128]{1,0:T(1,128)}', space=vmem, size = 0x12000, scoped, tag = 'internal scratch']
  %s0 = inlined_call_operand.hbm [shape: bf16[16,32], index: 0, kind: input, shape index: {}]
  %s1 = inlined_call_operand.hbm [shape: bf16[32,32], index: 1, kind: input, shape index: {}]
  %s2 = inlined_call_operand.vmem [shape: f32[1,32], index: 2, kind: input, shape index: {}]
  %s3 = inlined_call_operand.hbm [shape: bf16[32,32], index: 3, kind: input, shape index: {}]
  %s4 = inlined_call_operand.vmem [shape: f32[1,32], index: 4, kind: input, shape index: {}]
  %s5 = inlined_call_operand.vmem [shape: bf16[32,32], index: 5, kind: input, shape index: {}]
  %s6 = inlined_call_operand.vmem [shape: f32[1,32], index: 6, kind: input, shape index: {}]
  %s7 = inlined_call_operand.hbm [shape: bf16[16,32], index: 7, kind: output, shape index: {0}]
  %s8 = inlined_call_operand.hbm [shape: bf16[16,32], index: 8, kind: output, shape index: {1}]
  %s9 = inlined_call_operand.hbm [shape: bf16[16,32], index: 9, kind: output, shape index: {2}]
  %10 = xla_tuple %s7, %s8, %s9
  %s11 = sld [smem:[#allocation0]]
  $region66: #{tpu_custom_call.1} parent=0
    _
  %s13 = ssub.s32 1, %s11
  %s14 = scalar_select 0, %s13, %s11
  $region1: #{tpu_custom_call.1} parent=0
    #allocation2 [shape = 'u8[4096]{0}', space=vmem, size = 0x1000, scoped, tag = 'input window, operand 0, single buffered']
    #allocation3 [shape = 's32[1]{0}', space=sflag, size = 0x4, scoped, tag = 'scoped memory for tpu_custom_call.1']
    #allocation4 [shape = 's32[1]{0}', space=sflag, size = 0x4, scoped, tag = 'scoped memory for tpu_custom_call.1']
    #allocation5 [shape = 'u8[8192]{0}', space=vmem, size = 0x2000, scoped, tag = 'input window, operand 1, single buffered']
    #allocation6 [shape = 's32[1]{0}', space=sflag, size = 0x4, scoped, tag = 'scoped memory for tpu_custom_call.1']
    #allocation7 [shape = 'u8[8192]{0}', space=vmem, size = 0x2000, scoped, tag = 'input window, operand 3, single buffered']
    #allocation8 [shape = 'u8[4096]{0}', space=vmem, size = 0x1000, scoped, tag = 'output window, operand 0, single buffered']
    #allocation9 [shape = 'u8[4096]{0}', space=vmem, size = 0x1000, scoped, tag = 'output window, operand 1, single buffered']
    #allocation10 [shape = 's32[1]{0}', space=sflag, size = 0x4, scoped, tag = 'scoped memory for tpu_custom_call.1']
    #allocation11 [shape = 'u8[4096]{0}', space=vmem, size = 0x1000, scoped, tag = 'output window, operand 2, single buffered']
    %15 = vsyncpa [#allocation3], 0
    %16 = vsyncpa [#allocation6], 0
    %17 = vsyncpa [#allocation4], 0
    %18 = vsyncpa [#allocation10], 0
    // Predicated region
    $region2: #{tpu_custom_call.1} parent=1 // pred_check
      _
    $region3: #{tpu_custom_call.1} parent=1 // pred_check_branch
      %20 = sbr.rel (0) target = $region5
    $region4: #{tpu_custom_call.1} parent=1 // pred_region
      %s22 = ssub.s32 128, 128
      %23 = vsyncadd [#allocation3], %s22
      %s24 = sshll.u32 [#allocation2], 4
      %s25 = int_to_ptr.vmem [resolvable:$true] %s24
      %30 = dma.hbm_to_vmem [thread:$0]  %s0, 128, %s25, [#allocation3], 64, 64, 4
    $region5: #{tpu_custom_call.1} parent=1 // pred_fallthru
      _
    // Predicated region
    $region6: #{tpu_custom_call.1} parent=1 // pred_check
      _
    $region7: #{tpu_custom_call.1} parent=1 // pred_check_branch
      %32 = sbr.rel (0) target = $region9
    $region8: #{tpu_custom_call.1} parent=1 // pred_region
      %s34 = ssub.s32 256, 256
      %35 = vsyncadd [#allocation6], %s34
      %s36 = sshll.u32 [#allocation5], 4
      %s37 = int_to_ptr.vmem [resolvable:$true] %s36
      %42 = dma.hbm_to_vmem [thread:$0]  %s1, 256, %s37, [#allocation6], 64, 64, 4
    $region9: #{tpu_custom_call.1} parent=1 // pred_fallthru
      _
    // Predicated region
    $region10: #{tpu_custom_call.1} parent=1 // pred_check
      _
    $region11: #{tpu_custom_call.1} parent=1 // pred_check_branch
      %44 = sbr.rel (0) target = $region13
    $region12: #{tpu_custom_call.1} parent=1 // pred_region
      _
    $region13: #{tpu_custom_call.1} parent=1 // pred_fallthru
      _
    // Predicated region
    $region14: #{tpu_custom_call.1} parent=1 // pred_check
      _
    $region15: #{tpu_custom_call.1} parent=1 // pred_check_branch
      %46 = sbr.rel (0) target = $region17
    $region16: #{tpu_custom_call.1} parent=1 // pred_region
      %s48 = ssub.s32 256, 256
      %49 = vsyncadd [#allocation6], %s48
      %s50 = sshll.u32 [#allocation7], 4
      %s51 = int_to_ptr.vmem [resolvable:$true] %s50
      %56 = dma.hbm_to_vmem [thread:$0]  %s3, 256, %s51, [#allocation6], 64, 64, 4
    $region17: #{tpu_custom_call.1} parent=1 // pred_fallthru
      _
    // Predicated region
    $region18: #{tpu_custom_call.1} parent=1 // pred_check
      _
    $region19: #{tpu_custom_call.1} parent=1 // pred_check_branch
      %58 = sbr.rel (0) target = $region21
    $region20: #{tpu_custom_call.1} parent=1 // pred_region
      _
    $region21: #{tpu_custom_call.1} parent=1 // pred_fallthru
      _
    // Predicated region
    $region22: #{tpu_custom_call.1} parent=1 // pred_check
      _
    $region23: #{tpu_custom_call.1} parent=1 // pred_check_branch
      %60 = sbr.rel (0) target = $region25
    $region24: #{tpu_custom_call.1} parent=1 // pred_region
      _
    $region25: #{tpu_custom_call.1} parent=1 // pred_fallthru
      _
    // Predicated region
    $region26: #{tpu_custom_call.1} parent=1 // pred_check
      _
    $region27: #{tpu_custom_call.1} parent=1 // pred_check_branch
      %62 = sbr.rel (0) target = $region29
    $region28: #{tpu_custom_call.1} parent=1 // pred_region
      _
    $region29: #{tpu_custom_call.1} parent=1 // pred_fallthru
      _
    // Predicated region
    $region30: #{tpu_custom_call.1} parent=1 // pred_check
      _
    $region31: #{tpu_custom_call.1} parent=1 // pred_check_branch
      %64 = sbr.rel (0) target = $region33
    $region32: #{tpu_custom_call.1} parent=1 // pred_region
      %65 = dma.done [#allocation3], 128
    $region33: #{tpu_custom_call.1} parent=1 // pred_fallthru
      _
    // Predicated region
    $region34: #{tpu_custom_call.1} parent=1 // pred_check
      _
    $region35: #{tpu_custom_call.1} parent=1 // pred_check_branch
      %67 = sbr.rel (0) target = $region37
    $region36: #{tpu_custom_call.1} parent=1 // pred_region
      %68 = dma.done [#allocation6], 256
    $region37: #{tpu_custom_call.1} parent=1 // pred_fallthru
      _
    // Predicated region
    $region38: #{tpu_custom_call.1} parent=1 // pred_check
      _
    $region39: #{tpu_custom_call.1} parent=1 // pred_check_branch
      %70 = sbr.rel (0) target = $region41
    $region40: #{tpu_custom_call.1} parent=1 // pred_region
      %71 = dma.done [#allocation6], 256
    $region41: #{tpu_custom_call.1} parent=1 // pred_fallthru
      _
    %v73 = vld [vmem:[#allocation2] sm:$0xf]
    %v74 = vld [vmem:[#allocation2 + $0x4] sm:$0xf]
    %v75 = vld [vmem:[#allocation5] sm:$0xf]
    %v76 = vld [vmem:[#allocation5 + $0x4] sm:$0xf]
    %v77 = vld [vmem:[#allocation5 + $0x8] sm:$0xf]
    %v78 = vld [vmem:[#allocation5 + $0xc] sm:$0xf]
    %v79 = vld [vmem:[%s2] sm:$0x1]
    %v81 = vlaneseq
    %v82 = vshrl.u32 %v81, 7
    %v83 = vsub.s32 0, %v82
    %v84 = vrot.slane %v79, %v83
    %v88 = vunpack.c.l.b16 %v73
    %v89 = vunpack.c.l.b16 %v74
    %v90 = vpack.c.b16 %v89, %v88
    %v95 = vunpack.c.l.b16 %v75
    %v96 = vunpack.c.l.b16 %v76
    %v97 = vunpack.c.l.b16 %v77
    %v98 = vunpack.c.l.b16 %v78
    %v99 = vpack.c.b16 %v96, %v95
    %v100 = vpack.c.b16 %v98, %v97
    %vm103 = vcmask 261120
    %v105 = vsel %vm103, %v90, 0
    %107 = vmatprep.subr.bf16.mxu0 0
    %108 = vmatpush1.bf16.msra.mxu0 %v99
    %109 = vmatprep.subr.bf16.mxu0 0
    %110 = vmatpush1.bf16.msra.mxu0 %v100
    %111 = vmatprep.subr.bf16.mxu0 0
    %112 = vmatpush1.bf16.msra.mxu0 0
    %113 = vmatprep.subr.bf16.mxu0 0
    %114 = vmatpush1.bf16.msra.mxu0 0
    %115 = vmatprep.subr.bf16.mxu0 0
    %116 = vmatpush1.bf16.msra.mxu0 0
    %117 = vmatprep.subr.bf16.mxu0 0
    %118 = vmatpush1.bf16.msra.mxu0 0
    %119 = vmatprep.subr.bf16.mxu0 0
    %120 = vmatpush1.bf16.msra.mxu0 0
    %121 = vmatprep.subr.bf16.mxu0 0
    %122 = vmatpush1.bf16.msra.mxu0 0
    %123 = vmatprep.subr.bf16.mxu0 0
    %124 = vmatpush1.bf16.msra.mxu0 0
    %125 = vmatprep.subr.bf16.mxu0 0
    %126 = vmatpush1.bf16.msra.mxu0 0
    %127 = vmatprep.subr.bf16.mxu0 0
    %128 = vmatpush1.bf16.msra.mxu0 0
    %129 = vmatprep.subr.bf16.mxu0 0
    %130 = vmatpush1.bf16.msra.mxu0 0
    %131 = vmatprep.subr.bf16.mxu0 0
    %132 = vmatpush1.bf16.msra.mxu0 0
    %133 = vmatprep.subr.bf16.mxu0 0
    %134 = vmatpush1.bf16.msra.mxu0 0
    %135 = vmatprep.subr.bf16.mxu0 0
    %136 = vmatpush1.bf16.msra.mxu0 0
    %137 = vmatprep.subr.bf16.mxu0 0
    %138 = vmatpush1.bf16.msra.mxu0 0
    %139 = vmatprep.mubr.bf16.mxu0 0
    %140 = vmatmul.mubr.bf16.gmra.mrb[0].mxu0 %v105
    %v141 = vpop.f32.mrb[0].mxu0
    %v142 = vadd.f32 %v84, %v141
    %v143 = vpop.f32.mrb[0].mxu0
    %v144 = vpop.f32.mrb[0].mxu0
    %v145 = vadd.f32 %v84, %v144
    %v146 = vpop.f32.mrb[0].mxu0
    %147 = vdwg.mxu0
    %v148 = vpack.c.bf16 %v145, %v142
    %v150 = vunpack.c.l.b16 %v148
    %v151 = vunpack.c.h.b16 %v148
    %v152 = vpack.c.b16 %v150, %v150
    %v153 = vpack.c.b16 %v151, %v151
    %vm156 = vcmask 257024
    %157 = vst.msk [vmem:[#allocation8] sm:$0xf] %vm156, %v152
    %158 = vst.msk [vmem:[#allocation8 + $0x4] sm:$0xf] %vm156, %v153
    %v159 = vld [vmem:[#allocation7] sm:$0xf]
    %v160 = vld [vmem:[#allocation7 + $0x4] sm:$0xf]
    %v161 = vld [vmem:[#allocation7 + $0x8] sm:$0xf]
    %v162 = vld [vmem:[#allocation7 + $0xc] sm:$0xf]
    %v163 = vld [vmem:[%s4] sm:$0x1]
    %v165 = vlaneseq
    %v166 = vshrl.u32 %v165, 7
    %v167 = vsub.s32 0, %v166
    %v168 = vrot.slane %v163, %v167
    %v174 = vunpack.c.l.b16 %v159
    %v175 = vunpack.c.l.b16 %v160
    %v176 = vunpack.c.l.b16 %v161
    %v177 = vunpack.c.l.b16 %v162
    %v178 = vpack.c.b16 %v175, %v174
    %v179 = vpack.c.b16 %v177, %v176
    %182 = vmatprep.subr.bf16.mxu0 0
    %183 = vmatpush1.bf16.msra.mxu0 %v178
    %184 = vmatprep.subr.bf16.mxu0 0
    %185 = vmatpush1.bf16.msra.mxu0 %v179
    %186 = vmatprep.subr.bf16.mxu0 0
    %187 = vmatpush1.bf16.msra.mxu0 0
    %188 = vmatprep.subr.bf16.mxu0 0
    %189 = vmatpush1.bf16.msra.mxu0 0
    %190 = vmatprep.subr.bf16.mxu0 0
    %191 = vmatpush1.bf16.msra.mxu0 0
    %192 = vmatprep.subr.bf16.mxu0 0
    %193 = vmatpush1.bf16.msra.mxu0 0
    %194 = vmatprep.subr.bf16.mxu0 0
    %195 = vmatpush1.bf16.msra.mxu0 0
    %196 = vmatprep.subr.bf16.mxu0 0
    %197 = vmatpush1.bf16.msra.mxu0 0
    %198 = vmatprep.subr.bf16.mxu0 0
    %199 = vmatpush1.bf16.msra.mxu0 0
    %200 = vmatprep.subr.bf16.mxu0 0
    %201 = vmatpush1.bf16.msra.mxu0 0
    %202 = vmatprep.subr.bf16.mxu0 0
    %203 = vmatpush1.bf16.msra.mxu0 0
    %204 = vmatprep.subr.bf16.mxu0 0
    %205 = vmatpush1.bf16.msra.mxu0 0
    %206 = vmatprep.subr.bf16.mxu0 0
    %207 = vmatpush1.bf16.msra.mxu0 0
    %208 = vmatprep.subr.bf16.mxu0 0
    %209 = vmatpush1.bf16.msra.mxu0 0
    %210 = vmatprep.subr.bf16.mxu0 0
    %211 = vmatpush1.bf16.msra.mxu0 0
    %212 = vmatprep.subr.bf16.mxu0 0
    %213 = vmatpush1.bf16.msra.mxu0 0
    %214 = vmatprep.mubr.bf16.mxu0 0
    %215 = vmatmul.mubr.bf16.gmra.mrb[0].mxu0 %v105
    %v216 = vpop.f32.mrb[0].mxu0
    %v217 = vadd.f32 %v168, %v216
    %v218 = vpop.f32.mrb[0].mxu0
    %v219 = vpop.f32.mrb[0].mxu0
    %v220 = vadd.f32 %v168, %v219
    %v221 = vpop.f32.mrb[0].mxu0
    %222 = vdwg.mxu0
    %v223 = vpack.c.bf16 %v220, %v217
    %v225 = vunpack.c.l.b16 %v223
    %v226 = vunpack.c.h.b16 %v223
    %v227 = vpack.c.b16 %v225, %v225
    %v228 = vpack.c.b16 %v226, %v226
    %231 = vst.msk [vmem:[#allocation9] sm:$0xf] %vm156, %v227
    %232 = vst.msk [vmem:[#allocation9 + $0x4] sm:$0xf] %vm156, %v228
    %v233 = vld [vmem:[%s5] sm:$0xf]
    %v234 = vld [vmem:[%s5 + $0x4] sm:$0xf]
    %v235 = vld [vmem:[%s5 + $0x8] sm:$0xf]
    %v236 = vld [vmem:[%s5 + $0xc] sm:$0xf]
    %v237 = vld [vmem:[%s6] sm:$0x1]
    %v239 = vlaneseq
    %v240 = vshrl.u32 %v239, 7
    %v241 = vsub.s32 0, %v240
    %v242 = vrot.slane %v237, %v241
    %v248 = vunpack.c.l.b16 %v233
    %v249 = vunpack.c.l.b16 %v234
    %v250 = vunpack.c.l.b16 %v235
    %v251 = vunpack.c.l.b16 %v236
    %v252 = vpack.c.b16 %v249, %v248
    %v253 = vpack.c.b16 %v251, %v250
    %256 = vmatprep.subr.bf16.mxu0 0
    %257 = vmatpush1.bf16.msra.mxu0 %v252
    %258 = vmatprep.subr.bf16.mxu0 0
    %259 = vmatpush1.bf16.msra.mxu0 %v253
    %260 = vmatprep.subr.bf16.mxu0 0
    %261 = vmatpush1.bf16.msra.mxu0 0
    %262 = vmatprep.subr.bf16.mxu0 0
    %263 = vmatpush1.bf16.msra.mxu0 0
    %264 = vmatprep.subr.bf16.mxu0 0
    %265 = vmatpush1.bf16.msra.mxu0 0
    %266 = vmatprep.subr.bf16.mxu0 0
    %267 = vmatpush1.bf16.msra.mxu0 0
    %268 = vmatprep.subr.bf16.mxu0 0
    %269 = vmatpush1.bf16.msra.mxu0 0
    %270 = vmatprep.subr.bf16.mxu0 0
    %271 = vmatpush1.bf16.msra.mxu0 0
    %272 = vmatprep.subr.bf16.mxu0 0
    %273 = vmatpush1.bf16.msra.mxu0 0
    %274 = vmatprep.subr.bf16.mxu0 0
    %275 = vmatpush1.bf16.msra.mxu0 0
    %276 = vmatprep.subr.bf16.mxu0 0
    %277 = vmatpush1.bf16.msra.mxu0 0
    %278 = vmatprep.subr.bf16.mxu0 0
    %279 = vmatpush1.bf16.msra.mxu0 0
    %280 = vmatprep.subr.bf16.mxu0 0
    %281 = vmatpush1.bf16.msra.mxu0 0
    %282 = vmatprep.subr.bf16.mxu0 0
    %283 = vmatpush1.bf16.msra.mxu0 0
    %284 = vmatprep.subr.bf16.mxu0 0
    %285 = vmatpush1.bf16.msra.mxu0 0
    %286 = vmatprep.subr.bf16.mxu0 0
    %287 = vmatpush1.bf16.msra.mxu0 0
    %288 = vmatprep.mubr.bf16.mxu0 0
    %289 = vmatmul.mubr.bf16.gmra.mrb[0].mxu0 %v105
    %v290 = vpop.f32.mrb[0].mxu0
    %v291 = vadd.f32 %v242, %v290
    %v292 = vpop.f32.mrb[0].mxu0
    %v293 = vpop.f32.mrb[0].mxu0
    %v294 = vadd.f32 %v242, %v293
    %v295 = vpop.f32.mrb[0].mxu0
    %296 = vdwg.mxu0
    %v297 = vpack.c.bf16 %v294, %v291
    %v299 = vunpack.c.l.b16 %v297
    %v300 = vunpack.c.h.b16 %v297
    %v301 = vpack.c.b16 %v299, %v299
    %v302 = vpack.c.b16 %v300, %v300
    %305 = vst.msk [vmem:[#allocation11] sm:$0xf] %vm156, %v301
    %306 = vst.msk [vmem:[#allocation11 + $0x4] sm:$0xf] %vm156, %v302
    // Predicated region
    $region42: #{tpu_custom_call.1} parent=1 // pred_check
      _
    $region43: #{tpu_custom_call.1} parent=1 // pred_check_branch
      %308 = sbr.rel (0) target = $region45
    $region44: #{tpu_custom_call.1} parent=1 // pred_region
      %s310 = ssub.s32 128, 128
      %311 = vsyncadd [#allocation4], %s310
      %s312 = sshll.u32 [#allocation8], 4
      %s313 = int_to_ptr.vmem [resolvable:$true] %s312
      %318 = dma.vmem_to_hbm [thread:$0]  %s313, 128, %s7, [#allocation4], 64, 64, 4
    $region45: #{tpu_custom_call.1} parent=1 // pred_fallthru
      _
    // Predicated region
    $region46: #{tpu_custom_call.1} parent=1 // pred_check
      _
    $region47: #{tpu_custom_call.1} parent=1 // pred_check_branch
      %320 = sbr.rel (0) target = $region49
    $region48: #{tpu_custom_call.1} parent=1 // pred_region
      %s322 = ssub.s32 128, 128
      %323 = vsyncadd [#allocation10], %s322
      %s324 = sshll.u32 [#allocation9], 4
      %s325 = int_to_ptr.vmem [resolvable:$true] %s324
      %330 = dma.vmem_to_hbm [thread:$0]  %s325, 128, %s8, [#allocation10], 64, 64, 4
    $region49: #{tpu_custom_call.1} parent=1 // pred_fallthru
      _
    // Predicated region
    $region50: #{tpu_custom_call.1} parent=1 // pred_check
      _
    $region51: #{tpu_custom_call.1} parent=1 // pred_check_branch
      %332 = sbr.rel (0) target = $region53
    $region52: #{tpu_custom_call.1} parent=1 // pred_region
      %s334 = ssub.s32 128, 128
      %335 = vsyncadd [#allocation10], %s334
      %s336 = sshll.u32 [#allocation11], 4
      %s337 = int_to_ptr.vmem [resolvable:$true] %s336
      %342 = dma.vmem_to_hbm [thread:$0]  %s337, 128, %s9, [#allocation10], 64, 64, 4
    $region53: #{tpu_custom_call.1} parent=1 // pred_fallthru
      _
    // Predicated region
    $region54: #{tpu_custom_call.1} parent=1 // pred_check
      _
    $region55: #{tpu_custom_call.1} parent=1 // pred_check_branch
      %344 = sbr.rel (0) target = $region57
    $region56: #{tpu_custom_call.1} parent=1 // pred_region
      %345 = dma.done [#allocation4], 128
    $region57: #{tpu_custom_call.1} parent=1 // pred_fallthru
      _
    // Predicated region
    $region58: #{tpu_custom_call.1} parent=1 // pred_check
      _
    $region59: #{tpu_custom_call.1} parent=1 // pred_check_branch
      %347 = sbr.rel (0) target = $region61
    $region60: #{tpu_custom_call.1} parent=1 // pred_region
      %348 = dma.done [#allocation10], 128
    $region61: #{tpu_custom_call.1} parent=1 // pred_fallthru
      _
    // Predicated region
    $region62: #{tpu_custom_call.1} parent=1 // pred_check
      _
    $region63: #{tpu_custom_call.1} parent=1 // pred_check_branch
      %350 = sbr.rel (0) target = $region65
    $region64: #{tpu_custom_call.1} parent=1 // pred_region
      %351 = dma.done [#allocation10], 128
    $region65: #{tpu_custom_call.1} parent=1 // pred_fallthru
      _
    %352 = vsyncpa [#allocation3], 1
    %353 = vsyncpa [#allocation6], 1
    %354 = vsyncpa [#allocation4], 1
    %355 = vsyncpa [#allocation10], 1

</llo_original>
